<compile_context>
chip_gen: v6e
topology: v6e:2x2x1
jax: 0.10.0
libtpu: 0.0.40
codegen_flags: <defaults>
</compile_context>

<pallas_src>
import functools

import jax
import jax.numpy as jnp
from jax.experimental import pallas as pl
from jax.experimental.pallas import tpu as pltpu

OUT_LANES = 128  # lane-dense output block; column 0 carries the result


def _mlp_kernel(x_ref, w1_ref, b1_ref, w2_ref, b2_ref, w3_ref, b3_ref, o_ref,
                *, clip, clip_min, clip_max):
    # Layer 1: bf16 MXU matmul with f32 accumulation; bias + ReLU in f32.
    x = x_ref[...].astype(jnp.bfloat16)
    h1 = jnp.dot(x, w1_ref[...], preferred_element_type=jnp.float32)
    h1 = jnp.maximum(h1 + b1_ref[...], 0.0)

    # Layer 2: bf16 MXU matmul with f32 accumulation.
    h2 = jnp.dot(h1.astype(jnp.bfloat16), w2_ref[...],
                 preferred_element_type=jnp.float32)
    h2 = jnp.maximum(h2 + b2_ref[...], 0.0)

    # Output layer (N=1): VPU multiply + XLU lane reduction instead of an
    # almost-empty MXU pass.  w3_ref is the (1, H2) f32 row of the weight.
    out = jnp.sum(h2 * w3_ref[...], axis=-1, keepdims=True) + b3_ref[...]
    if clip:
        out = jnp.clip(out, clip_min, clip_max)

    # Lane-dense, unmasked store: broadcast the scalar column across lanes.
    o_ref[...] = jnp.broadcast_to(out, o_ref.shape).astype(o_ref.dtype)


def _round_up(x, m):
    return ((x + m - 1) // m) * m


def _choose_block_b(batch):
    """Pick the batch tile.

    batch <= 512: a single 8-aligned tile (no padding waste, one grid step).
    batch  > 512: a 128-multiple tile (<=512) that minimizes padding, biased
                  toward larger tiles on ties (amortizes per-step overhead).
    """
    if batch <= 512:
        return _round_up(batch, 8)
    best_bb, best_pad = 128, (-batch) % 128
    for bb in (256, 384, 512):
        pad = (-batch) % bb
        if pad <= best_pad:
            best_bb, best_pad = bb, pad
    return best_bb


def discriminator_forward(inputs, params, *, clip=False, clip_min=-40.0,
                          clip_max=40.0, block_b=None):
    """inputs: (B, obs_dim + action_dim) f32. Returns (B,) f32."""
    w1, b1, w2, b2, w3, b3 = params
    B, D = inputs.shape
    H1 = w1.shape[1]
    H2 = w2.shape[1]
    assert w1.shape == (D, H1) and w2.shape == (H1, H2) and w3.shape == (H2, 1)

    if block_b is None:
        block_b = _choose_block_b(B)

    # Pad batch to a multiple of the batch tile (zero rows are sliced off).
    pad_b = (-B) % block_b
    x = jnp.pad(inputs, ((0, pad_b), (0, 0))) if pad_b else inputs
    Bp = B + pad_b

    # Weights feeding the MXU go in as bf16 (halves their DMA bytes; f32
    # accumulation keeps precision).  Biases and the output row stay f32.
    w1_bf = w1.astype(jnp.bfloat16)
    w2_bf = w2.astype(jnp.bfloat16)
    w3_row = w3.reshape(1, H2).astype(jnp.float32)

    kernel = functools.partial(_mlp_kernel, clip=clip,
                               clip_min=clip_min, clip_max=clip_max)

    out = pl.pallas_call(
        kernel,
        out_shape=jax.ShapeDtypeStruct((Bp, OUT_LANES), jnp.float32),
        grid_spec=pltpu.PrefetchScalarGridSpec(
            num_scalar_prefetch=0,
            grid=(Bp // block_b,),
            in_specs=[
                pl.BlockSpec((block_b, D), lambda i: (i, 0)),   # x tile
                pl.BlockSpec((D, H1), lambda i: (0, 0)),        # w1 (bf16)
                pl.BlockSpec((1, H1), lambda i: (0, 0)),        # b1
                pl.BlockSpec((H1, H2), lambda i: (0, 0)),       # w2 (bf16)
                pl.BlockSpec((1, H2), lambda i: (0, 0)),        # b2
                pl.BlockSpec((1, H2), lambda i: (0, 0)),        # w3 row (f32)
                pl.BlockSpec((1, 1), lambda i: (0, 0)),         # b3
            ],
            out_specs=pl.BlockSpec((block_b, OUT_LANES), lambda i: (i, 0)),
        ),
        compiler_params=pltpu.CompilerParams(
            dimension_semantics=("parallel",)),
    )(x, w1_bf, b1, w2_bf, b2, w3_row, b3)

    return out[:B, 0]  # equivalent of output.view(-1)


def init_params(key, in_dim, net_arch, out_dim=1):
    """Deterministic orthogonal init (mirrors init_ortho), biases = 0."""
    dims = [in_dim] + list(net_arch) + [out_dim]
    ortho = jax.nn.initializers.orthogonal()
    params = []
    for d_in, d_out in zip(dims[:-1], dims[1:]):
        key, sub = jax.random.split(key)
        w = ortho(sub, (d_in, d_out), jnp.float32)
        b = jnp.zeros((1, d_out), jnp.float32)
        params.extend([w, b])
    return tuple(params)


def reference_forward(inputs, params, *, clip=False):
    """Pure-JAX f32 reference of the PyTorch forward."""
    w1, b1, w2, b2, w3, b3 = params
    h = jnp.maximum(inputs @ w1 + b1, 0.0)
    h = jnp.maximum(h @ w2 + b2, 0.0)
    o = h @ w3 + b3
    if clip:
        o = jnp.clip(o, -40.0, 40.0)
    return o.reshape(-1)


if __name__ == "__main__":
    # Continuous action space case: net_arch = [256, 256].
    obs_dim = 16
    action_dim = 4
    net_arch = [256, 256]
    batch = 16

    key = jax.random.PRNGKey(0)
    k_in, k_par = jax.random.split(key)

    params = init_params(k_par, obs_dim + action_dim, net_arch, out_dim=1)
    inputs = jax.random.normal(k_in, (batch, obs_dim + action_dim), jnp.float32)

    out = discriminator_forward(inputs, params, clip=True)
    out = jax.block_until_ready(out)

    ref = reference_forward(inputs, params, clip=True)
    assert out.shape == (batch,)
    # Kernel uses bf16 MXU inputs with f32 accumulation -> loose tolerance
    # vs. the pure-f32 reference.
    assert jnp.allclose(out, ref, atol=5e-2, rtol=5e-2), (out, ref)

    print("KERNEL_OK")
</pallas_src>

<mosaic_0001>
module attributes {stable_mosaic.version = 11 : i64} {
  func.func @_mlp_kernel(%arg0: i32, %arg1: memref<16x20xf32, #tpu.memory_space<vmem>>, %arg2: memref<20x256xbf16, #tpu.memory_space<vmem>>, %arg3: memref<1x256xf32, #tpu.memory_space<vmem>>, %arg4: memref<256x256xbf16, #tpu.memory_space<vmem>>, %arg5: memref<1x256xf32, #tpu.memory_space<vmem>>, %arg6: memref<1x256xf32, #tpu.memory_space<vmem>>, %arg7: memref<1x1xf32, #tpu.memory_space<vmem>>, %arg8: memref<16x128xf32, #tpu.memory_space<vmem>>) attributes {dimension_semantics = [#tpu.dimension_semantics<parallel>], iteration_bounds = array<i64: 1>, scalar_prefetch = 0 : i64, scratch_operands = 0 : i64, tpu.core_type = #tpu.core_type<tc>, window_params = [{transform_indices = @transform_0, window_bounds = array<i64: 16, 20>}, {pipeline_mode = #tpu.pipeline_mode<synchronous>, transform_indices = @transform_1, window_bounds = array<i64: 20, 256>}, {pipeline_mode = #tpu.pipeline_mode<synchronous>, transform_indices = @transform_2, window_bounds = array<i64: 1, 256>}, {pipeline_mode = #tpu.pipeline_mode<synchronous>, transform_indices = @transform_3, window_bounds = array<i64: 256, 256>}, {pipeline_mode = #tpu.pipeline_mode<synchronous>, transform_indices = @transform_4, window_bounds = array<i64: 1, 256>}, {pipeline_mode = #tpu.pipeline_mode<synchronous>, transform_indices = @transform_5, window_bounds = array<i64: 1, 256>}, {pipeline_mode = #tpu.pipeline_mode<synchronous>, transform_indices = @transform_6, window_bounds = array<i64: 1, 1>}, {transform_indices = @transform_7, window_bounds = array<i64: 16, 128>}]} {
    %c0 = arith.constant 0 : index
    %c0_0 = arith.constant 0 : index
    %0 = vector.load %arg1[%c0, %c0_0] : memref<16x20xf32, #tpu.memory_space<vmem>>, vector<16x20xf32>
    %1 = arith.truncf %0 : vector<16x20xf32> to vector<16x20xbf16>
    %c0_1 = arith.constant 0 : index
    %c0_2 = arith.constant 0 : index
    %2 = vector.load %arg2[%c0_1, %c0_2] : memref<20x256xbf16, #tpu.memory_space<vmem>>, vector<20x256xbf16>
    %cst = arith.constant dense<0.000000e+00> : vector<16x256xf32>
    %3 = tpu.matmul %1, %2, %cst {dimension_numbers = #tpu.dot_dimension_numbers<[1], [0], [0], [1], [0, 0, 1, 1], [], []>} : vector<16x20xbf16>, vector<20x256xbf16>, vector<16x256xf32> -> vector<16x256xf32>
    %c0_3 = arith.constant 0 : index
    %c0_4 = arith.constant 0 : index
    %4 = vector.load %arg3[%c0_3, %c0_4] : memref<1x256xf32, #tpu.memory_space<vmem>>, vector<1x256xf32>
    %5 = vector.broadcast %4 : vector<1x256xf32> to vector<16x256xf32>
    %6 = arith.addf %3, %5 : vector<16x256xf32>
    %cst_5 = arith.constant 0.000000e+00 : f32
    %7 = vector.broadcast %cst_5 : f32 to vector<16x256xf32>
    %8 = arith.maximumf %6, %7 : vector<16x256xf32>
    %9 = arith.truncf %8 : vector<16x256xf32> to vector<16x256xbf16>
    %c0_6 = arith.constant 0 : index
    %c0_7 = arith.constant 0 : index
    %10 = vector.load %arg4[%c0_6, %c0_7] : memref<256x256xbf16, #tpu.memory_space<vmem>>, vector<256x256xbf16>
    %cst_8 = arith.constant dense<0.000000e+00> : vector<16x256xf32>
    %11 = tpu.matmul %9, %10, %cst_8 {dimension_numbers = #tpu.dot_dimension_numbers<[1], [0], [0], [1], [0, 0, 1, 1], [], []>} : vector<16x256xbf16>, vector<256x256xbf16>, vector<16x256xf32> -> vector<16x256xf32>
    %c0_9 = arith.constant 0 : index
    %c0_10 = arith.constant 0 : index
    %12 = vector.load %arg5[%c0_9, %c0_10] : memref<1x256xf32, #tpu.memory_space<vmem>>, vector<1x256xf32>
    %13 = vector.broadcast %12 : vector<1x256xf32> to vector<16x256xf32>
    %14 = arith.addf %11, %13 : vector<16x256xf32>
    %cst_11 = arith.constant 0.000000e+00 : f32
    %15 = vector.broadcast %cst_11 : f32 to vector<16x256xf32>
    %16 = arith.maximumf %14, %15 : vector<16x256xf32>
    %c0_12 = arith.constant 0 : index
    %c0_13 = arith.constant 0 : index
    %17 = vector.load %arg6[%c0_12, %c0_13] : memref<1x256xf32, #tpu.memory_space<vmem>>, vector<1x256xf32>
    %18 = vector.broadcast %17 : vector<1x256xf32> to vector<16x256xf32>
    %19 = arith.mulf %16, %18 : vector<16x256xf32>
    %cst_14 = arith.constant dense<0.000000e+00> : vector<16xf32>
    %20 = vector.multi_reduction <add>, %19, %cst_14 [1] : vector<16x256xf32> to vector<16xf32>
    %21 = vector.shape_cast %20 : vector<16xf32> to vector<16x1xf32>
    %c0_15 = arith.constant 0 : index
    %c0_16 = arith.constant 0 : index
    %22 = vector.load %arg7[%c0_15, %c0_16] : memref<1x1xf32, #tpu.memory_space<vmem>>, vector<1x1xf32>
    %23 = vector.broadcast %22 : vector<1x1xf32> to vector<16x1xf32>
    %24 = arith.addf %21, %23 : vector<16x1xf32>
    %cst_17 = arith.constant -4.000000e+01 : f32
    %cst_18 = arith.constant 4.000000e+01 : f32
    %25 = vector.broadcast %cst_17 : f32 to vector<16x1xf32>
    %26 = arith.maximumf %25, %24 : vector<16x1xf32>
    %27 = vector.broadcast %cst_18 : f32 to vector<16x1xf32>
    %28 = arith.minimumf %27, %26 : vector<16x1xf32>
    %29 = vector.shape_cast %28 : vector<16x1xf32> to vector<16x1xf32>
    %30 = vector.broadcast %29 : vector<16x1xf32> to vector<16x128xf32>
    %c0_19 = arith.constant 0 : index
    %c0_20 = arith.constant 0 : index
    %31 = vector.load %arg8[%c0_19, %c0_20] : memref<16x128xf32, #tpu.memory_space<vmem>>, vector<16x128xf32>
    tpu.vector_store %arg8[%c0_19, %c0_20], %30 {strides = array<i32>} : memref<16x128xf32, #tpu.memory_space<vmem>>, vector<16x128xf32>,
    return
  }
  func.func @transform_0(%arg0: i32) -> (i32, i32) {
    %c0_i32 = arith.constant 0 : i32
    %c0_i32_0 = arith.constant 0 : i32
    return %arg0, %c0_i32 : i32, i32
  }
  func.func @transform_1(%arg0: i32) -> (i32, i32) {
    %c0_i32 = arith.constant 0 : i32
    %c0_i32_0 = arith.constant 0 : i32
    %c0_i32_1 = arith.constant 0 : i32
    return %c0_i32, %c0_i32_0 : i32, i32
  }
  func.func @transform_2(%arg0: i32) -> (i32, i32) {
    %c0_i32 = arith.constant 0 : i32
    %c0_i32_0 = arith.constant 0 : i32
    %c0_i32_1 = arith.constant 0 : i32
    return %c0_i32, %c0_i32_0 : i32, i32
  }
  func.func @transform_3(%arg0: i32) -> (i32, i32) {
    %c0_i32 = arith.constant 0 : i32
    %c0_i32_0 = arith.constant 0 : i32
    %c0_i32_1 = arith.constant 0 : i32
    return %c0_i32, %c0_i32_0 : i32, i32
  }
  func.func @transform_4(%arg0: i32) -> (i32, i32) {
    %c0_i32 = arith.constant 0 : i32
    %c0_i32_0 = arith.constant 0 : i32
    %c0_i32_1 = arith.constant 0 : i32
    return %c0_i32, %c0_i32_0 : i32, i32
  }
  func.func @transform_5(%arg0: i32) -> (i32, i32) {
    %c0_i32 = arith.constant 0 : i32
    %c0_i32_0 = arith.constant 0 : i32
    %c0_i32_1 = arith.constant 0 : i32
    return %c0_i32, %c0_i32_0 : i32, i32
  }
  func.func @transform_6(%arg0: i32) -> (i32, i32) {
    %c0_i32 = arith.constant 0 : i32
    %c0_i32_0 = arith.constant 0 : i32
    %c0_i32_1 = arith.constant 0 : i32
    return %c0_i32, %c0_i32_0 : i32, i32
  }
  func.func @transform_7(%arg0: i32) -> (i32, i32) {
    %c0_i32 = arith.constant 0 : i32
    %c0_i32_0 = arith.constant 0 : i32
    return %arg0, %c0_i32 : i32, i32
  }
}

</mosaic_0001>

<llo_original>
// kernel: tpu_custom_call.1
$region0: #{tpu_custom_call.1}
  #allocation0 [shape = 'u32[]', space=smem, size = 0x4, offset = 0x4, fixed_abs, tag = 'smem constant byte address 0x4 - core index']
  #allocation1 [shape = 'u32[144,128]{1,0:T(1,128)}', space=vmem, size = 0x12000, scoped, tag = 'internal scratch']
  #allocation2 [shape = 'f32[1,1]{1,0:T(1,128)S(1)}', space=vmem, size = 0x200, scoped, tag = 'scoped memory for tpu_custom_call.1']
  %s0 = inlined_call_operand.hbm [shape: f32[16,20], index: 0, kind: input, shape index: {}]
  %s1 = inlined_call_operand.hbm [shape: bf16[20,256], index: 1, kind: input, shape index: {}]
  %s2 = inlined_call_operand.vmem [shape: f32[1,256], index: 2, kind: input, shape index: {}]
  %s3 = inlined_call_operand.hbm [shape: bf16[256,256], index: 3, kind: input, shape index: {}]
  %s4 = inlined_call_operand.vmem [shape: f32[1,256], index: 4, kind: input, shape index: {}]
  %s5 = inlined_call_operand.vmem [shape: f32[1,256], index: 5, kind: input, shape index: {}]
  %s6 = inlined_call_operand.<no memory space> [shape: f32[1,1], index: 6, kind: input, shape index: {}]
  %s7 = inlined_call_operand.hbm [shape: f32[16,128], index: 7, kind: output, shape index: {}]
  %s8 = sld [smem:[#allocation0]]
  $region50: #{tpu_custom_call.1} parent=0
    _
  %s10 = ssub.s32 1, %s8
  %s11 = scalar_select 0, %s10, %s8
  %v12 = vstv %s6
  %13 = vst [vmem:[#allocation2] sm:$0x1] %v12
  $region1: #{tpu_custom_call.1} parent=0
    #allocation3 [shape = 'u8[8192]{0}', space=vmem, size = 0x2000, scoped, tag = 'input window, operand 0, single buffered']
    #allocation4 [shape = 's32[1]{0}', space=sflag, size = 0x4, scoped, tag = 'scoped memory for tpu_custom_call.1']
    #allocation5 [shape = 's32[1]{0}', space=sflag, size = 0x4, scoped, tag = 'scoped memory for tpu_custom_call.1']
    #allocation6 [shape = 'u8[12288]{0}', space=vmem, size = 0x3000, scoped, tag = 'input window, operand 1, single buffered']
    #allocation7 [shape = 's32[1]{0}', space=sflag, size = 0x4, scoped, tag = 'scoped memory for tpu_custom_call.1']
    #allocation8 [shape = 'u8[131072]{0}', space=vmem, size = 0x20000, scoped, tag = 'input window, operand 3, single buffered']
    #allocation9 [shape = 'u8[8192]{0}', space=vmem, size = 0x2000, scoped, tag = 'output window, operand 0, single buffered']
    %14 = vsyncpa [#allocation4], 0
    %15 = vsyncpa [#allocation7], 0
    %16 = vsyncpa [#allocation5], 0
    // Predicated region
    $region2: #{tpu_custom_call.1} parent=1 // pred_check
      _
    $region3: #{tpu_custom_call.1} parent=1 // pred_check_branch
      %18 = sbr.rel (0) target = $region5
    $region4: #{tpu_custom_call.1} parent=1 // pred_region
      %s20 = ssub.s32 256, 256
      %21 = vsyncadd [#allocation4], %s20
      %s22 = sshll.u32 [#allocation3], 4
      %s23 = int_to_ptr.vmem [resolvable:$true] %s22
      %28 = dma.hbm_to_vmem [thread:$0]  %s0, 256, %s23, [#allocation4], 128, 128, 8
    $region5: #{tpu_custom_call.1} parent=1 // pred_fallthru
      _
    // Predicated region
    $region6: #{tpu_custom_call.1} parent=1 // pred_check
      _
    $region7: #{tpu_custom_call.1} parent=1 // pred_check_branch
      %30 = sbr.rel (0) target = $region9
    $region8: #{tpu_custom_call.1} parent=1 // pred_region
      %s32 = ssub.s32 384, 384
      %33 = vsyncadd [#allocation7], %s32
      %s34 = sshll.u32 [#allocation6], 4
      %s35 = int_to_ptr.vmem [resolvable:$true] %s34
      %40 = dma.hbm_to_vmem [thread:$0]  %s1, 384, %s35, [#allocation7], 128, 128, 8
    $region9: #{tpu_custom_call.1} parent=1 // pred_fallthru
      _
    // Predicated region
    $region10: #{tpu_custom_call.1} parent=1 // pred_check
      _
    $region11: #{tpu_custom_call.1} parent=1 // pred_check_branch
      %42 = sbr.rel (0) target = $region13
    $region12: #{tpu_custom_call.1} parent=1 // pred_region
      _
    $region13: #{tpu_custom_call.1} parent=1 // pred_fallthru
      _
    // Predicated region
    $region14: #{tpu_custom_call.1} parent=1 // pred_check
      _
    $region15: #{tpu_custom_call.1} parent=1 // pred_check_branch
      %44 = sbr.rel (0) target = $region17
    $region16: #{tpu_custom_call.1} parent=1 // pred_region
      %s46 = ssub.s32 4096, 4096
      %47 = vsyncadd [#allocation7], %s46
      %s48 = sshll.u32 [#allocation8], 4
      %s49 = int_to_ptr.vmem [resolvable:$true] %s48
      %54 = dma.hbm_to_vmem [thread:$0]  %s3, 4096, %s49, [#allocation7], 128, 128, 8
    $region17: #{tpu_custom_call.1} parent=1 // pred_fallthru
      _
    // Predicated region
    $region18: #{tpu_custom_call.1} parent=1 // pred_check
      _
    $region19: #{tpu_custom_call.1} parent=1 // pred_check_branch
      %56 = sbr.rel (0) target = $region21
    $region20: #{tpu_custom_call.1} parent=1 // pred_region
      _
    $region21: #{tpu_custom_call.1} parent=1 // pred_fallthru
      _
    // Predicated region
    $region22: #{tpu_custom_call.1} parent=1 // pred_check
      _
    $region23: #{tpu_custom_call.1} parent=1 // pred_check_branch
      %58 = sbr.rel (0) target = $region25
    $region24: #{tpu_custom_call.1} parent=1 // pred_region
      _
    $region25: #{tpu_custom_call.1} parent=1 // pred_fallthru
      _
    // Predicated region
    $region26: #{tpu_custom_call.1} parent=1 // pred_check
      _
    $region27: #{tpu_custom_call.1} parent=1 // pred_check_branch
      %60 = sbr.rel (0) target = $region29
    $region28: #{tpu_custom_call.1} parent=1 // pred_region
      _
    $region29: #{tpu_custom_call.1} parent=1 // pred_fallthru
      _
    // Predicated region
    $region30: #{tpu_custom_call.1} parent=1 // pred_check
      _
    $region31: #{tpu_custom_call.1} parent=1 // pred_check_branch
      %62 = sbr.rel (0) target = $region33
    $region32: #{tpu_custom_call.1} parent=1 // pred_region
      %63 = dma.done [#allocation4], 256
    $region33: #{tpu_custom_call.1} parent=1 // pred_fallthru
      _
    // Predicated region
    $region34: #{tpu_custom_call.1} parent=1 // pred_check
      _
    $region35: #{tpu_custom_call.1} parent=1 // pred_check_branch
      %65 = sbr.rel (0) target = $region37
    $region36: #{tpu_custom_call.1} parent=1 // pred_region
      %66 = dma.done [#allocation7], 384
    $region37: #{tpu_custom_call.1} parent=1 // pred_fallthru
      _
    // Predicated region
    $region38: #{tpu_custom_call.1} parent=1 // pred_check
      _
    $region39: #{tpu_custom_call.1} parent=1 // pred_check_branch
      %68 = sbr.rel (0) target = $region41
    $region40: #{tpu_custom_call.1} parent=1 // pred_region
      %69 = dma.done [#allocation7], 4096
    $region41: #{tpu_custom_call.1} parent=1 // pred_fallthru
      _
    %v71 = vld [vmem:[#allocation3] sm:$0xff]
    %v72 = vld [vmem:[#allocation3 + $0x8] sm:$0xff]
    %v73 = vpack.c.bf16 %v72, %v71
    %v74 = vld [vmem:[#allocation6] sm:$0xff]
    %v75 = vld [vmem:[#allocation6 + $0x8] sm:$0xff]
    %v76 = vld [vmem:[#allocation6 + $0x10] sm:$0x33]
    %v77 = vld [vmem:[%s2] sm:$0x3]
    %v79 = vlaneseq
    %v80 = vshrl.u32 %v79, 7
    %v81 = vsub.s32 0, %v80
    %v82 = vrot.slane %v77, %v81
    %v83 = vlaneseq
    %v84 = vshrl.u32 %v83, 7
    %v85 = vsub.s32 1, %v84
    %v86 = vrot.slane %v77, %v85
    %v92 = vunpack.c.l.b16 %v74
    %v93 = vunpack.c.h.b16 %v74
    %v94 = vunpack.c.l.b16 %v75
    %v95 = vunpack.c.h.b16 %v75
    %v96 = vunpack.c.l.b16 %v76
    %v97 = vunpack.c.h.b16 %v76
    %v98 = vpack.c.b16 %v94, %v92
    %v99 = vpack.c.b16 %v95, %v93
    %v100 = vpack.c.b16 %v96, %v96
    %v101 = vpack.c.b16 %v97, %v97
    %vm104 = vcmask 162816
    %v106 = vsel %vm104, %v73, 0
    %vm108 = vcmask 1041408
    %v110 = vsel %vm108, %v100, 0
    %v113 = vsel %vm108, %v101, 0
    %115 = vmatprep.subr.bf16.mxu0 0
    %116 = vmatpush1.bf16.msra.mxu0 0
    %117 = vmatprep.subr.bf16.mxu0 0
    %118 = vmatpush1.bf16.msra.mxu0 0
    %119 = vmatprep.subr.bf16.mxu0 0
    %120 = vmatpush1.bf16.msra.mxu0 0
    %121 = vmatprep.subr.bf16.mxu0 0
    %122 = vmatpush1.bf16.msra.mxu0 0
    %123 = vmatprep.subr.bf16.mxu0 0
    %124 = vmatpush1.bf16.msra.mxu0 0
    %125 = vmatprep.subr.bf16.mxu0 0
    %126 = vmatpush1.bf16.msra.mxu0 0
    %127 = vmatprep.subr.bf16.mxu0 %v113
    %128 = vmatpush1.bf16.msra.mxu0 %v110
    %129 = vmatprep.subr.bf16.mxu0 %v99
    %130 = vmatpush1.bf16.msra.mxu0 %v98
    %131 = vmatprep.subr.bf16.mxu0 0
    %132 = vmatpush2.bf16.msra.mxu0 0
    %133 = vmatprep.subr.bf16.mxu0 0
    %134 = vmatpush2.bf16.msra.mxu0 0
    %135 = vmatprep.subr.bf16.mxu0 0
    %136 = vmatpush2.bf16.msra.mxu0 0
    %137 = vmatprep.subr.bf16.mxu0 0
    %138 = vmatpush2.bf16.msra.mxu0 0
    %139 = vmatprep.subr.bf16.mxu0 0
    %140 = vmatpush2.bf16.msra.mxu0 0
    %141 = vmatprep.subr.bf16.mxu0 0
    %142 = vmatpush2.bf16.msra.mxu0 0
    %143 = vmatprep.subr.bf16.mxu0 0
    %144 = vmatpush2.bf16.msra.mxu0 0
    %145 = vmatprep.subr.bf16.mxu0 0
    %146 = vmatpush2.bf16.msra.mxu0 0
    %147 = vmatprep.mubr.bf16.mxu0 0
    %148 = vmatmul.mubr.bf16.gmra.mxu0 %v106
    %v149 = vpop.f32.mrf.mxu0
    %v150 = vadd.f32 %v82, %v149
    %v151 = vpop.f32.mrf.mxu0
    %v152 = vadd.f32 %v86, %v151
    %v153 = vpop.f32.mrf.mxu0
    %v154 = vadd.f32 %v82, %v153
    %v155 = vpop.f32.mrf.mxu0
    %v156 = vadd.f32 %v86, %v155
    %157 = vdwg.mxu0
    %v158 = vmax.f32 %v150, 0.0
    %v159 = vmax.f32 %v152, 0.0
    %v160 = vmax.f32 %v154, 0.0
    %v161 = vmax.f32 %v156, 0.0
    %v162 = vpack.c.bf16 %v160, %v158
    %v163 = vpack.c.bf16 %v161, %v159
    %v164 = vld [vmem:[#allocation8] sm:$0xff]
    %v165 = vld [vmem:[#allocation8 + $0x8] sm:$0xff]
    %v166 = vld [vmem:[#allocation8 + $0x10] sm:$0xff]
    %v167 = vld [vmem:[#allocation8 + $0x18] sm:$0xff]
    %v168 = vld [vmem:[#allocation8 + $0x20] sm:$0xff]
    %v169 = vld [vmem:[#allocation8 + $0x28] sm:$0xff]
    %v170 = vld [vmem:[#allocation8 + $0x30] sm:$0xff]
    %v171 = vld [vmem:[#allocation8 + $0x38] sm:$0xff]
    %v172 = vld [vmem:[#allocation8 + $0x40] sm:$0xff]
    %v173 = vld [vmem:[#allocation8 + $0x48] sm:$0xff]
    %v174 = vld [vmem:[#allocation8 + $0x50] sm:$0xff]
    %v175 = vld [vmem:[#allocation8 + $0x58] sm:$0xff]
    %v176 = vld [vmem:[#allocation8 + $0x60] sm:$0xff]
    %v177 = vld [vmem:[#allocation8 + $0x68] sm:$0xff]
    %v178 = vld [vmem:[#allocation8 + $0x70] sm:$0xff]
    %v179 = vld [vmem:[#allocation8 + $0x78] sm:$0xff]
    %v180 = vld [vmem:[#allocation8 + $0x80] sm:$0xff]
    %v181 = vld [vmem:[#allocation8 + $0x88] sm:$0xff]
    %v182 = vld [vmem:[#allocation8 + $0x90] sm:$0xff]
    %v183 = vld [vmem:[#allocation8 + $0x98] sm:$0xff]
    %v184 = vld [vmem:[#allocation8 + $0xa0] sm:$0xff]
    %v185 = vld [vmem:[#allocation8 + $0xa8] sm:$0xff]
    %v186 = vld [vmem:[#allocation8 + $0xb0] sm:$0xff]
    %v187 = vld [vmem:[#allocation8 + $0xb8] sm:$0xff]
    %v188 = vld [vmem:[#allocation8 + $0xc0] sm:$0xff]
    %v189 = vld [vmem:[#allocation8 + $0xc8] sm:$0xff]
    %v190 = vld [vmem:[#allocation8 + $0xd0] sm:$0xff]
    %v191 = vld [vmem:[#allocation8 + $0xd8] sm:$0xff]
    %v192 = vld [vmem:[#allocation8 + $0xe0] sm:$0xff]
    %v193 = vld [vmem:[#allocation8 + $0xe8] sm:$0xff]
    %v194 = vld [vmem:[#allocation8 + $0xf0] sm:$0xff]
    %v195 = vld [vmem:[#allocation8 + $0xf8] sm:$0xff]
    %v196 = vld [vmem:[%s4] sm:$0x3]
    %v198 = vlaneseq
    %v199 = vshrl.u32 %v198, 7
    %v200 = vsub.s32 0, %v199
    %v201 = vrot.slane %v196, %v200
    %v202 = vlaneseq
    %v203 = vshrl.u32 %v202, 7
    %v204 = vsub.s32 1, %v203
    %v205 = vrot.slane %v196, %v204
    %v240 = vunpack.c.l.b16 %v164
    %v241 = vunpack.c.h.b16 %v164
    %v242 = vunpack.c.l.b16 %v165
    %v243 = vunpack.c.h.b16 %v165
    %v244 = vunpack.c.l.b16 %v166
    %v245 = vunpack.c.h.b16 %v166
    %v246 = vunpack.c.l.b16 %v167
    %v247 = vunpack.c.h.b16 %v167
    %v248 = vunpack.c.l.b16 %v168
    %v249 = vunpack.c.h.b16 %v168
    %v250 = vunpack.c.l.b16 %v169
    %v251 = vunpack.c.h.b16 %v169
    %v252 = vunpack.c.l.b16 %v170
    %v253 = vunpack.c.h.b16 %v170
    %v254 = vunpack.c.l.b16 %v171
    %v255 = vunpack.c.h.b16 %v171
    %v256 = vunpack.c.l.b16 %v172
    %v257 = vunpack.c.h.b16 %v172
    %v258 = vunpack.c.l.b16 %v173
    %v259 = vunpack.c.h.b16 %v173
    %v260 = vunpack.c.l.b16 %v174
    %v261 = vunpack.c.h.b16 %v174
    %v262 = vunpack.c.l.b16 %v175
    %v263 = vunpack.c.h.b16 %v175
    %v264 = vunpack.c.l.b16 %v176
    %v265 = vunpack.c.h.b16 %v176
    %v266 = vunpack.c.l.b16 %v177
    %v267 = vunpack.c.h.b16 %v177
    %v268 = vunpack.c.l.b16 %v178
    %v269 = vunpack.c.h.b16 %v178
    %v270 = vunpack.c.l.b16 %v179
    %v271 = vunpack.c.h.b16 %v179
    %v272 = vunpack.c.l.b16 %v180
    %v273 = vunpack.c.h.b16 %v180
    %v274 = vunpack.c.l.b16 %v181
    %v275 = vunpack.c.h.b16 %v181
    %v276 = vunpack.c.l.b16 %v182
    %v277 = vunpack.c.h.b16 %v182
    %v278 = vunpack.c.l.b16 %v183
    %v279 = vunpack.c.h.b16 %v183
    %v280 = vunpack.c.l.b16 %v184
    %v281 = vunpack.c.h.b16 %v184
    %v282 = vunpack.c.l.b16 %v185
    %v283 = vunpack.c.h.b16 %v185
    %v284 = vunpack.c.l.b16 %v186
    %v285 = vunpack.c.h.b16 %v186
    %v286 = vunpack.c.l.b16 %v187
    %v287 = vunpack.c.h.b16 %v187
    %v288 = vunpack.c.l.b16 %v188
    %v289 = vunpack.c.h.b16 %v188
    %v290 = vunpack.c.l.b16 %v189
    %v291 = vunpack.c.h.b16 %v189
    %v292 = vunpack.c.l.b16 %v190
    %v293 = vunpack.c.h.b16 %v190
    %v294 = vunpack.c.l.b16 %v191
    %v295 = vunpack.c.h.b16 %v191
    %v296 = vunpack.c.l.b16 %v192
    %v297 = vunpack.c.h.b16 %v192
    %v298 = vunpack.c.l.b16 %v193
    %v299 = vunpack.c.h.b16 %v193
    %v300 = vunpack.c.l.b16 %v194
    %v301 = vunpack.c.h.b16 %v194
    %v302 = vunpack.c.l.b16 %v195
    %v303 = vunpack.c.h.b16 %v195
    %v304 = vpack.c.b16 %v242, %v240
    %v305 = vpack.c.b16 %v243, %v241
    %v306 = vpack.c.b16 %v246, %v244
    %v307 = vpack.c.b16 %v247, %v245
    %v308 = vpack.c.b16 %v250, %v248
    %v309 = vpack.c.b16 %v251, %v249
    %v310 = vpack.c.b16 %v254, %v252
    %v311 = vpack.c.b16 %v255, %v253
    %v312 = vpack.c.b16 %v258, %v256
    %v313 = vpack.c.b16 %v259, %v257
    %v314 = vpack.c.b16 %v262, %v260
    %v315 = vpack.c.b16 %v263, %v261
    %v316 = vpack.c.b16 %v266, %v264
    %v317 = vpack.c.b16 %v267, %v265
    %v318 = vpack.c.b16 %v270, %v268
    %v319 = vpack.c.b16 %v271, %v269
    %v320 = vpack.c.b16 %v274, %v272
    %v321 = vpack.c.b16 %v275, %v273
    %v322 = vpack.c.b16 %v278, %v276
    %v323 = vpack.c.b16 %v279, %v277
    %v324 = vpack.c.b16 %v282, %v280
    %v325 = vpack.c.b16 %v283, %v281
    %v326 = vpack.c.b16 %v286, %v284
    %v327 = vpack.c.b16 %v287, %v285
    %v328 = vpack.c.b16 %v290, %v288
    %v329 = vpack.c.b16 %v291, %v289
    %v330 = vpack.c.b16 %v294, %v292
    %v331 = vpack.c.b16 %v295, %v293
    %v332 = vpack.c.b16 %v298, %v296
    %v333 = vpack.c.b16 %v299, %v297
    %v334 = vpack.c.b16 %v302, %v300
    %v335 = vpack.c.b16 %v303, %v301
    %368 = vmatprep.subr.bf16.mxu0 %v319
    %369 = vmatpush1.bf16.msra.mxu0 %v318
    %370 = vmatprep.subr.bf16.mxu0 %v317
    %371 = vmatpush1.bf16.msra.mxu0 %v316
    %372 = vmatprep.subr.bf16.mxu0 %v315
    %373 = vmatpush1.bf16.msra.mxu0 %v314
    %374 = vmatprep.subr.bf16.mxu0 %v313
    %375 = vmatpush1.bf16.msra.mxu0 %v312
    %376 = vmatprep.subr.bf16.mxu0 %v311
    %377 = vmatpush1.bf16.msra.mxu0 %v310
    %378 = vmatprep.subr.bf16.mxu0 %v309
    %379 = vmatpush1.bf16.msra.mxu0 %v308
    %380 = vmatprep.subr.bf16.mxu0 %v307
    %381 = vmatpush1.bf16.msra.mxu0 %v306
    %382 = vmatprep.subr.bf16.mxu0 %v305
    %383 = vmatpush1.bf16.msra.mxu0 %v304
    %384 = vmatprep.subr.bf16.mxu0 %v335
    %385 = vmatpush2.bf16.msra.mxu0 %v334
    %386 = vmatprep.subr.bf16.mxu0 %v333
    %387 = vmatpush2.bf16.msra.mxu0 %v332
    %388 = vmatprep.subr.bf16.mxu0 %v331
    %389 = vmatpush2.bf16.msra.mxu0 %v330
    %390 = vmatprep.subr.bf16.mxu0 %v329
    %391 = vmatpush2.bf16.msra.mxu0 %v328
    %392 = vmatprep.subr.bf16.mxu0 %v327
    %393 = vmatpush2.bf16.msra.mxu0 %v326
    %394 = vmatprep.subr.bf16.mxu0 %v325
    %395 = vmatpush2.bf16.msra.mxu0 %v324
    %396 = vmatprep.subr.bf16.mxu0 %v323
    %397 = vmatpush2.bf16.msra.mxu0 %v322
    %398 = vmatprep.subr.bf16.mxu0 %v321
    %399 = vmatpush2.bf16.msra.mxu0 %v320
    %400 = vmatprep.mubr.bf16.mxu0 %v163
    %401 = vmatmul.mubr.bf16.gmra.mxu0 %v162
    %v402 = vpop.f32.mrf.mxu0
    %v403 = vadd.f32 %v201, %v402
    %v404 = vpop.f32.mrf.mxu0
    %v405 = vadd.f32 %v205, %v404
    %v406 = vpop.f32.mrf.mxu0
    %v407 = vadd.f32 %v201, %v406
    %v408 = vpop.f32.mrf.mxu0
    %v409 = vadd.f32 %v205, %v408
    %410 = vdwg.mxu0
    %v411 = vmax.f32 %v403, 0.0
    %v412 = vmax.f32 %v405, 0.0
    %v413 = vmax.f32 %v407, 0.0
    %v414 = vmax.f32 %v409, 0.0
    %v415 = vld [vmem:[%s5] sm:$0x3]
    %v417 = vlaneseq
    %v418 = vshrl.u32 %v417, 7
    %v419 = vsub.s32 0, %v418
    %v420 = vrot.slane %v415, %v419
    %v421 = vlaneseq
    %v422 = vshrl.u32 %v421, 7
    %v423 = vsub.s32 1, %v422
    %v424 = vrot.slane %v415, %v423
    %v427 = vmul.f32 %v411, %v420
    %v428 = vmul.f32 %v412, %v424
    %v429 = vmul.f32 %v413, %v420
    %v430 = vmul.f32 %v414, %v424
    %v431 = vadd.f32 %v427, %v428
    %432 = vadd.xlane.f32.xlu0 %v431
    %v433 = vpop.xlane.xlu0 %432
    %v434 = vadd.f32 %v429, %v430
    %435 = vadd.xlane.f32.xlu0 %v434
    %v436 = vpop.xlane.xlu0 %435
    %v437 = vld [vmem:[#allocation2] sm:$0x1]
    %v439 = vlaneseq
    %v440 = vshrl.u32 %v439, 7
    %v441 = vsub.s32 0, %v440
    %v442 = vrot.slane %v437, %v441
    %v444 = vadd.f32 %v433, %v442
    %v445 = vadd.f32 %v436, %v442
    %v446 = vmax.f32 %v444, -40.0
    %v447 = vmax.f32 %v445, -40.0
    %v448 = vmin.f32 %v446, 40.0
    %v449 = vmin.f32 %v447, 40.0
    %451 = vset.pattern.permute.xlu0 0
    %452 = vperm.xlu0 %451, %v448
    %v453 = vpop.permute.xlu0 %452
    %456 = vset.pattern.permute.xlu0 0
    %457 = vperm.xlu0 %456, %v449
    %v458 = vpop.permute.xlu0 %457
    %460 = vst [vmem:[#allocation9] sm:$0xff] %v453
    %461 = vst [vmem:[#allocation9 + $0x8] sm:$0xff] %v458
    // Predicated region
    $region42: #{tpu_custom_call.1} parent=1 // pred_check
      _
    $region43: #{tpu_custom_call.1} parent=1 // pred_check_branch
      %463 = sbr.rel (0) target = $region45
    $region44: #{tpu_custom_call.1} parent=1 // pred_region
      %s465 = ssub.s32 256, 256
      %466 = vsyncadd [#allocation5], %s465
      %s467 = sshll.u32 [#allocation9], 4
      %s468 = int_to_ptr.vmem [resolvable:$true] %s467
      %473 = dma.vmem_to_hbm [thread:$0]  %s468, 256, %s7, [#allocation5], 128, 128, 8
    $region45: #{tpu_custom_call.1} parent=1 // pred_fallthru
      _
    // Predicated region
    $region46: #{tpu_custom_call.1} parent=1 // pred_check
      _
    $region47: #{tpu_custom_call.1} parent=1 // pred_check_branch
      %475 = sbr.rel (0) target = $region49
    $region48: #{tpu_custom_call.1} parent=1 // pred_region
      %476 = dma.done [#allocation5], 256
    $region49: #{tpu_custom_call.1} parent=1 // pred_fallthru
      _
    %477 = vsyncpa [#allocation4], 1
    %478 = vsyncpa [#allocation7], 1
    %479 = vsyncpa [#allocation5], 1

</llo_original>
